<compile_context>
chip_gen: v7x
topology: tpu7x:2x2x1
jax: 0.10.0
libtpu: 0.0.40
codegen_flags: <defaults>
</compile_context>

<pallas_src>
import jax
import jax.numpy as jnp
from jax.experimental import pallas as pl
from jax.experimental.pallas import tpu as pltpu


def lstm_encoder_kernel(x_ref, wih_ref, whh_ref, b_ref, h_ref, c_ref, gx_ref):
    """Whole-sequence LSTM encoder (single grid point).

    x_ref   : (T, Bp, E)      embedded tokens, time-major, batch padded to 8k
    wih_ref : (E, 4H)         input->gates weights (pre-transposed W_ih.T)
    whh_ref : (H, 4H)         hidden->gates weights (pre-transposed W_hh.T)
    b_ref   : (1, 4H)  f32    combined bias (b_ih + b_hh)
    h_ref   : (Bp, H)  f32    final hidden state (output)
    c_ref   : (Bp, H)  f32    final cell state   (output)
    gx_ref  : (T, Bp, 4H) f32 VMEM scratch: precomputed input projections
    """
    T, Bp, E = x_ref.shape
    H = h_ref.shape[-1]

    # ---- (1) Batched input projection for ALL timesteps: one big MXU matmul. ----
    # (T, Bp, E) -> (T*Bp, E) is a free relayout (Bp is a full sublane tile of 8).
    x_all = x_ref[...].reshape(T * Bp, E)
    gx = jnp.dot(x_all, wih_ref[...], preferred_element_type=jnp.float32) + b_ref[...]
    gx_ref[...] = gx.reshape(T, Bp, 4 * H)

    # ---- (2) Sequential recurrence; only h @ W_hh.T remains inside the loop. ----
    whh = whh_ref[...]
    w_dt = whh.dtype  # bf16 on v6e/v7x production configs; f32 here

    def step(t, carry):
        h, c = carry
        gates = gx_ref[t] + jnp.dot(
            h.astype(w_dt), whh, preferred_element_type=jnp.float32
        )  # (Bp, 4H), gate order [i, f, g, o] like PyTorch
        i = jax.nn.sigmoid(gates[:, 0:H])
        f = jax.nn.sigmoid(gates[:, H:2 * H])
        g = jnp.tanh(gates[:, 2 * H:3 * H])
        o = jax.nn.sigmoid(gates[:, 3 * H:4 * H])
        c_new = f * c + i * g
        h_new = o * jnp.tanh(c_new)
        return (h_new, c_new)

    h0 = jnp.zeros((Bp, H), jnp.float32)
    c0 = jnp.zeros((Bp, H), jnp.float32)
    h, c = jax.lax.fori_loop(0, T, step, (h0, c0), unroll=True)

    h_ref[...] = h
    c_ref[...] = c


def prepare_encoder_params(params, matmul_dtype=jnp.float32):
    """One-time parameter prep: pre-transpose weights, pre-sum the biases."""
    return {
        "embedding": params["embedding"],                                   # (V, E)
        "w_ih_t": params["w_ih"].T.astype(matmul_dtype),                    # (E, 4H)
        "w_hh_t": params["w_hh"].T.astype(matmul_dtype),                    # (H, 4H)
        "bias": (params["b_ih"] + params["b_hh"]).reshape(1, -1).astype(jnp.float32),
    }


def encoder_forward(instruction, prep):
    """instruction: (B, T) int32 tokens.  Returns (h_n, c_n), each (1, B, H) f32."""
    emb_table = prep["embedding"]
    wih_t, whh_t, bias = prep["w_ih_t"], prep["w_hh_t"], prep["bias"]

    B, T = instruction.shape
    E = emb_table.shape[1]
    H = whh_t.shape[0]

    # Pad batch to a multiple of 8 sublanes; padded rows use token 0 (zero
    # embedding, padding_idx=0) and are discarded after the kernel.
    Bp = max(8, -(-B // 8) * 8)
    tokens_tm = instruction.T                                   # (T, B), tiny
    if Bp != B:
        tokens_tm = jnp.pad(tokens_tm, ((0, 0), (0, Bp - B)))   # pad with token 0

    # Embedding gather (glue, plain JAX), produced directly time-major: (T, Bp, E).
    x_tbe = jnp.take(emb_table, tokens_tm, axis=0).astype(wih_t.dtype)

    h_pad, c_pad = pl.pallas_call(
        lstm_encoder_kernel,
        out_shape=(
            jax.ShapeDtypeStruct((Bp, H), jnp.float32),
            jax.ShapeDtypeStruct((Bp, H), jnp.float32),
        ),
        in_specs=[pl.BlockSpec(memory_space=pltpu.MemorySpace.VMEM)] * 4,
        out_specs=(
            pl.BlockSpec(memory_space=pltpu.MemorySpace.VMEM),
            pl.BlockSpec(memory_space=pltpu.MemorySpace.VMEM),
        ),
        scratch_shapes=[pltpu.VMEM((T, Bp, 4 * H), jnp.float32)],
    )(x_tbe, wih_t, whh_t, bias)

    h_n = h_pad[None, :B, :]
    c_n = c_pad[None, :B, :]
    return h_n, c_n


def encoder_reference(instruction, params):
    """Pure-JAX reference (lax.scan) mirroring torch.nn.LSTM semantics."""
    emb = jnp.take(params["embedding"], instruction, axis=0)   # (B, T, E)
    w_ih, w_hh = params["w_ih"], params["w_hh"]
    b = params["b_ih"] + params["b_hh"]
    H = w_hh.shape[1]
    B = instruction.shape[0]

    def step(carry, x_t):
        h, c = carry
        gates = x_t @ w_ih.T + h @ w_hh.T + b
        i = jax.nn.sigmoid(gates[:, 0:H])
        f = jax.nn.sigmoid(gates[:, H:2 * H])
        g = jnp.tanh(gates[:, 2 * H:3 * H])
        o = jax.nn.sigmoid(gates[:, 3 * H:4 * H])
        c = f * c + i * g
        h = o * jnp.tanh(c)
        return (h, c), None

    init = (jnp.zeros((B, H), jnp.float32), jnp.zeros((B, H), jnp.float32))
    (h, c), _ = jax.lax.scan(step, init, jnp.transpose(emb, (1, 0, 2)))
    return h[None], c[None]


def init_params(key, vocab_size, embedding_dim, hidden_dim):
    """Deterministic parameter init matching the shapes in Encoder.__init__."""
    k_emb, k1, k2, k3, k4 = jax.random.split(key, 5)
    emb = 0.1 * jax.random.normal(k_emb, (vocab_size, embedding_dim), jnp.float32)
    emb = emb.at[0].set(0.0)   # padding_idx=0
    bound = 1.0 / jnp.sqrt(hidden_dim)   # PyTorch LSTM default U(-1/sqrt(H), 1/sqrt(H))
    u = lambda k, shape: jax.random.uniform(k, shape, jnp.float32, -bound, bound)
    return {
        "embedding": emb,
        "w_ih": u(k1, (4 * hidden_dim, embedding_dim)),
        "w_hh": u(k2, (4 * hidden_dim, hidden_dim)),
        "b_ih": u(k3, (4 * hidden_dim,)),
        "b_hh": u(k4, (4 * hidden_dim,)),
    }


if __name__ == "__main__":
    # Small shapes consistent with the module: batch=2, seq=8, vocab=50, E=32, H=32.
    VOCAB, E, H = 50, 32, 32
    B, T = 2, 8

    key = jax.random.PRNGKey(0)
    k_params, k_tok = jax.random.split(key)
    params = init_params(k_params, VOCAB, E, H)
    instruction = jax.random.randint(k_tok, (B, T), 0, VOCAB, dtype=jnp.int32)

    # One-time param prep (pre-transposed weights, summed bias).
    prep = prepare_encoder_params(params)   # use matmul_dtype=jnp.bfloat16 on v6e/v7x prod sizes

    h_n, c_n = jax.jit(encoder_forward)(instruction, prep)
    jax.block_until_ready((h_n, c_n))

    h_ref, c_ref = encoder_reference(instruction, params)
    assert h_n.shape == (1, B, H) and c_n.shape == (1, B, H)
    assert jnp.allclose(h_n, h_ref, rtol=1e-4, atol=1e-4)
    assert jnp.allclose(c_n, c_ref, rtol=1e-4, atol=1e-4)

    print("KERNEL_OK")
</pallas_src>

<mosaic_0001>
module attributes {stable_mosaic.version = 11 : i64} {
  func.func @lstm_encoder_kernel(%arg0: memref<8x8x32xf32, #tpu.memory_space<vmem>>, %arg1: memref<32x128xf32, #tpu.memory_space<vmem>>, %arg2: memref<32x128xf32, #tpu.memory_space<vmem>>, %arg3: memref<1x128xf32, #tpu.memory_space<vmem>>, %arg4: memref<8x32xf32, #tpu.memory_space<vmem>>, %arg5: memref<8x32xf32, #tpu.memory_space<vmem>>, %arg6: memref<8x8x128xf32, #tpu.memory_space<vmem>>) attributes {dimension_semantics = [], scalar_prefetch = 0 : i64, scratch_operands = 1 : i64, tpu.core_type = #tpu.core_type<tc>} {
    %c0 = arith.constant 0 : index
    %c0_0 = arith.constant 0 : index
    %c0_1 = arith.constant 0 : index
    %0 = vector.load %arg0[%c0, %c0_0, %c0_1] : memref<8x8x32xf32, #tpu.memory_space<vmem>>, vector<8x8x32xf32>
    %1 = vector.shape_cast %0 : vector<8x8x32xf32> to vector<64x32xf32>
    %c0_2 = arith.constant 0 : index
    %c0_3 = arith.constant 0 : index
    %2 = vector.load %arg1[%c0_2, %c0_3] : memref<32x128xf32, #tpu.memory_space<vmem>>, vector<32x128xf32>
    %cst = arith.constant dense<0.000000e+00> : vector<64x128xf32>
    %3 = tpu.matmul %1, %2, %cst {dimension_numbers = #tpu.dot_dimension_numbers<[1], [0], [0], [1], [0, 0, 1, 1], [], []>} : vector<64x32xf32>, vector<32x128xf32>, vector<64x128xf32> -> vector<64x128xf32>
    %c0_4 = arith.constant 0 : index
    %c0_5 = arith.constant 0 : index
    %4 = vector.load %arg3[%c0_4, %c0_5] : memref<1x128xf32, #tpu.memory_space<vmem>>, vector<1x128xf32>
    %5 = vector.broadcast %4 : vector<1x128xf32> to vector<64x128xf32>
    %6 = arith.addf %3, %5 : vector<64x128xf32>
    %7 = vector.shape_cast %6 : vector<64x128xf32> to vector<8x8x128xf32>
    %c0_6 = arith.constant 0 : index
    %c0_7 = arith.constant 0 : index
    %c0_8 = arith.constant 0 : index
    %8 = vector.load %arg6[%c0_6, %c0_7, %c0_8] : memref<8x8x128xf32, #tpu.memory_space<vmem>>, vector<8x8x128xf32>
    tpu.vector_store %arg6[%c0_6, %c0_7, %c0_8], %7 {strides = array<i32>} : memref<8x8x128xf32, #tpu.memory_space<vmem>>, vector<8x8x128xf32>,
    %c0_9 = arith.constant 0 : index
    %c0_10 = arith.constant 0 : index
    %9 = vector.load %arg2[%c0_9, %c0_10] : memref<32x128xf32, #tpu.memory_space<vmem>>, vector<32x128xf32>
    %cst_11 = arith.constant 0.000000e+00 : f32
    %10 = vector.broadcast %cst_11 : f32 to vector<8x32xf32>
    %cst_12 = arith.constant 0.000000e+00 : f32
    %11 = vector.broadcast %cst_12 : f32 to vector<8x32xf32>
    %c0_i32 = arith.constant 0 : i32
    %12 = arith.index_cast %c0_i32 : i32 to index
    %c0_13 = arith.constant 0 : index
    %c0_14 = arith.constant 0 : index
    %13 = vector.load %arg6[%12, %c0_13, %c0_14] : memref<8x8x128xf32, #tpu.memory_space<vmem>>, vector<1x8x128xf32>
    %14 = vector.shape_cast %13 : vector<1x8x128xf32> to vector<8x128xf32>
    %cst_15 = arith.constant dense<0.000000e+00> : vector<8x128xf32>
    %15 = tpu.matmul %10, %9, %cst_15 {dimension_numbers = #tpu.dot_dimension_numbers<[1], [0], [0], [1], [0, 0, 1, 1], [], []>} : vector<8x32xf32>, vector<32x128xf32>, vector<8x128xf32> -> vector<8x128xf32>
    %16 = arith.addf %14, %15 : vector<8x128xf32>
    %17 = vector.extract_strided_slice %16 {offsets = [0, 0], sizes = [8, 32], strides = [1, 1]} : vector<8x128xf32> to vector<8x32xf32>
    %18 = arith.negf %17 : vector<8x32xf32>
    %19 = math.exp %18 : vector<8x32xf32>
    %cst_16 = arith.constant 1.000000e+00 : f32
    %20 = vector.broadcast %cst_16 : f32 to vector<8x32xf32>
    %21 = arith.addf %20, %19 : vector<8x32xf32>
    %22 = arith.divf %20, %21 : vector<8x32xf32>
    %23 = vector.extract_strided_slice %16 {offsets = [0, 32], sizes = [8, 32], strides = [1, 1]} : vector<8x128xf32> to vector<8x32xf32>
    %24 = arith.negf %23 : vector<8x32xf32>
    %25 = math.exp %24 : vector<8x32xf32>
    %cst_17 = arith.constant 1.000000e+00 : f32
    %26 = vector.broadcast %cst_17 : f32 to vector<8x32xf32>
    %27 = arith.addf %26, %25 : vector<8x32xf32>
    %28 = arith.divf %26, %27 : vector<8x32xf32>
    %29 = vector.extract_strided_slice %16 {offsets = [0, 64], sizes = [8, 32], strides = [1, 1]} : vector<8x128xf32> to vector<8x32xf32>
    %30 = math.tanh %29 : vector<8x32xf32>
    %31 = vector.extract_strided_slice %16 {offsets = [0, 96], sizes = [8, 32], strides = [1, 1]} : vector<8x128xf32> to vector<8x32xf32>
    %32 = arith.negf %31 : vector<8x32xf32>
    %33 = math.exp %32 : vector<8x32xf32>
    %cst_18 = arith.constant 1.000000e+00 : f32
    %34 = vector.broadcast %cst_18 : f32 to vector<8x32xf32>
    %35 = arith.addf %34, %33 : vector<8x32xf32>
    %36 = arith.divf %34, %35 : vector<8x32xf32>
    %37 = arith.mulf %28, %11 : vector<8x32xf32>
    %38 = arith.mulf %22, %30 : vector<8x32xf32>
    %39 = arith.addf %37, %38 : vector<8x32xf32>
    %40 = math.tanh %39 : vector<8x32xf32>
    %41 = arith.mulf %36, %40 : vector<8x32xf32>
    %c1_i32 = arith.constant 1 : i32
    %42 = arith.index_cast %c1_i32 : i32 to index
    %c0_19 = arith.constant 0 : index
    %c0_20 = arith.constant 0 : index
    %43 = vector.load %arg6[%42, %c0_19, %c0_20] : memref<8x8x128xf32, #tpu.memory_space<vmem>>, vector<1x8x128xf32>
    %44 = vector.shape_cast %43 : vector<1x8x128xf32> to vector<8x128xf32>
    %cst_21 = arith.constant dense<0.000000e+00> : vector<8x128xf32>
    %45 = tpu.matmul %41, %9, %cst_21 {dimension_numbers = #tpu.dot_dimension_numbers<[1], [0], [0], [1], [0, 0, 1, 1], [], []>} : vector<8x32xf32>, vector<32x128xf32>, vector<8x128xf32> -> vector<8x128xf32>
    %46 = arith.addf %44, %45 : vector<8x128xf32>
    %47 = vector.extract_strided_slice %46 {offsets = [0, 0], sizes = [8, 32], strides = [1, 1]} : vector<8x128xf32> to vector<8x32xf32>
    %48 = arith.negf %47 : vector<8x32xf32>
    %49 = math.exp %48 : vector<8x32xf32>
    %cst_22 = arith.constant 1.000000e+00 : f32
    %50 = vector.broadcast %cst_22 : f32 to vector<8x32xf32>
    %51 = arith.addf %50, %49 : vector<8x32xf32>
    %52 = arith.divf %50, %51 : vector<8x32xf32>
    %53 = vector.extract_strided_slice %46 {offsets = [0, 32], sizes = [8, 32], strides = [1, 1]} : vector<8x128xf32> to vector<8x32xf32>
    %54 = arith.negf %53 : vector<8x32xf32>
    %55 = math.exp %54 : vector<8x32xf32>
    %cst_23 = arith.constant 1.000000e+00 : f32
    %56 = vector.broadcast %cst_23 : f32 to vector<8x32xf32>
    %57 = arith.addf %56, %55 : vector<8x32xf32>
    %58 = arith.divf %56, %57 : vector<8x32xf32>
    %59 = vector.extract_strided_slice %46 {offsets = [0, 64], sizes = [8, 32], strides = [1, 1]} : vector<8x128xf32> to vector<8x32xf32>
    %60 = math.tanh %59 : vector<8x32xf32>
    %61 = vector.extract_strided_slice %46 {offsets = [0, 96], sizes = [8, 32], strides = [1, 1]} : vector<8x128xf32> to vector<8x32xf32>
    %62 = arith.negf %61 : vector<8x32xf32>
    %63 = math.exp %62 : vector<8x32xf32>
    %cst_24 = arith.constant 1.000000e+00 : f32
    %64 = vector.broadcast %cst_24 : f32 to vector<8x32xf32>
    %65 = arith.addf %64, %63 : vector<8x32xf32>
    %66 = arith.divf %64, %65 : vector<8x32xf32>
    %67 = arith.mulf %58, %39 : vector<8x32xf32>
    %68 = arith.mulf %52, %60 : vector<8x32xf32>
    %69 = arith.addf %67, %68 : vector<8x32xf32>
    %70 = math.tanh %69 : vector<8x32xf32>
    %71 = arith.mulf %66, %70 : vector<8x32xf32>
    %c2_i32 = arith.constant 2 : i32
    %72 = arith.index_cast %c2_i32 : i32 to index
    %c0_25 = arith.constant 0 : index
    %c0_26 = arith.constant 0 : index
    %73 = vector.load %arg6[%72, %c0_25, %c0_26] : memref<8x8x128xf32, #tpu.memory_space<vmem>>, vector<1x8x128xf32>
    %74 = vector.shape_cast %73 : vector<1x8x128xf32> to vector<8x128xf32>
    %cst_27 = arith.constant dense<0.000000e+00> : vector<8x128xf32>
    %75 = tpu.matmul %71, %9, %cst_27 {dimension_numbers = #tpu.dot_dimension_numbers<[1], [0], [0], [1], [0, 0, 1, 1], [], []>} : vector<8x32xf32>, vector<32x128xf32>, vector<8x128xf32> -> vector<8x128xf32>
    %76 = arith.addf %74, %75 : vector<8x128xf32>
    %77 = vector.extract_strided_slice %76 {offsets = [0, 0], sizes = [8, 32], strides = [1, 1]} : vector<8x128xf32> to vector<8x32xf32>
    %78 = arith.negf %77 : vector<8x32xf32>
    %79 = math.exp %78 : vector<8x32xf32>
    %cst_28 = arith.constant 1.000000e+00 : f32
    %80 = vector.broadcast %cst_28 : f32 to vector<8x32xf32>
    %81 = arith.addf %80, %79 : vector<8x32xf32>
    %82 = arith.divf %80, %81 : vector<8x32xf32>
    %83 = vector.extract_strided_slice %76 {offsets = [0, 32], sizes = [8, 32], strides = [1, 1]} : vector<8x128xf32> to vector<8x32xf32>
    %84 = arith.negf %83 : vector<8x32xf32>
    %85 = math.exp %84 : vector<8x32xf32>
    %cst_29 = arith.constant 1.000000e+00 : f32
    %86 = vector.broadcast %cst_29 : f32 to vector<8x32xf32>
    %87 = arith.addf %86, %85 : vector<8x32xf32>
    %88 = arith.divf %86, %87 : vector<8x32xf32>
    %89 = vector.extract_strided_slice %76 {offsets = [0, 64], sizes = [8, 32], strides = [1, 1]} : vector<8x128xf32> to vector<8x32xf32>
    %90 = math.tanh %89 : vector<8x32xf32>
    %91 = vector.extract_strided_slice %76 {offsets = [0, 96], sizes = [8, 32], strides = [1, 1]} : vector<8x128xf32> to vector<8x32xf32>
    %92 = arith.negf %91 : vector<8x32xf32>
    %93 = math.exp %92 : vector<8x32xf32>
    %cst_30 = arith.constant 1.000000e+00 : f32
    %94 = vector.broadcast %cst_30 : f32 to vector<8x32xf32>
    %95 = arith.addf %94, %93 : vector<8x32xf32>
    %96 = arith.divf %94, %95 : vector<8x32xf32>
    %97 = arith.mulf %88, %69 : vector<8x32xf32>
    %98 = arith.mulf %82, %90 : vector<8x32xf32>
    %99 = arith.addf %97, %98 : vector<8x32xf32>
    %100 = math.tanh %99 : vector<8x32xf32>
    %101 = arith.mulf %96, %100 : vector<8x32xf32>
    %c3_i32 = arith.constant 3 : i32
    %102 = arith.index_cast %c3_i32 : i32 to index
    %c0_31 = arith.constant 0 : index
    %c0_32 = arith.constant 0 : index
    %103 = vector.load %arg6[%102, %c0_31, %c0_32] : memref<8x8x128xf32, #tpu.memory_space<vmem>>, vector<1x8x128xf32>
    %104 = vector.shape_cast %103 : vector<1x8x128xf32> to vector<8x128xf32>
    %cst_33 = arith.constant dense<0.000000e+00> : vector<8x128xf32>
    %105 = tpu.matmul %101, %9, %cst_33 {dimension_numbers = #tpu.dot_dimension_numbers<[1], [0], [0], [1], [0, 0, 1, 1], [], []>} : vector<8x32xf32>, vector<32x128xf32>, vector<8x128xf32> -> vector<8x128xf32>
    %106 = arith.addf %104, %105 : vector<8x128xf32>
    %107 = vector.extract_strided_slice %106 {offsets = [0, 0], sizes = [8, 32], strides = [1, 1]} : vector<8x128xf32> to vector<8x32xf32>
    %108 = arith.negf %107 : vector<8x32xf32>
    %109 = math.exp %108 : vector<8x32xf32>
    %cst_34 = arith.constant 1.000000e+00 : f32
    %110 = vector.broadcast %cst_34 : f32 to vector<8x32xf32>
    %111 = arith.addf %110, %109 : vector<8x32xf32>
    %112 = arith.divf %110, %111 : vector<8x32xf32>
    %113 = vector.extract_strided_slice %106 {offsets = [0, 32], sizes = [8, 32], strides = [1, 1]} : vector<8x128xf32> to vector<8x32xf32>
    %114 = arith.negf %113 : vector<8x32xf32>
    %115 = math.exp %114 : vector<8x32xf32>
    %cst_35 = arith.constant 1.000000e+00 : f32
    %116 = vector.broadcast %cst_35 : f32 to vector<8x32xf32>
    %117 = arith.addf %116, %115 : vector<8x32xf32>
    %118 = arith.divf %116, %117 : vector<8x32xf32>
    %119 = vector.extract_strided_slice %106 {offsets = [0, 64], sizes = [8, 32], strides = [1, 1]} : vector<8x128xf32> to vector<8x32xf32>
    %120 = math.tanh %119 : vector<8x32xf32>
    %121 = vector.extract_strided_slice %106 {offsets = [0, 96], sizes = [8, 32], strides = [1, 1]} : vector<8x128xf32> to vector<8x32xf32>
    %122 = arith.negf %121 : vector<8x32xf32>
    %123 = math.exp %122 : vector<8x32xf32>
    %cst_36 = arith.constant 1.000000e+00 : f32
    %124 = vector.broadcast %cst_36 : f32 to vector<8x32xf32>
    %125 = arith.addf %124, %123 : vector<8x32xf32>
    %126 = arith.divf %124, %125 : vector<8x32xf32>
    %127 = arith.mulf %118, %99 : vector<8x32xf32>
    %128 = arith.mulf %112, %120 : vector<8x32xf32>
    %129 = arith.addf %127, %128 : vector<8x32xf32>
    %130 = math.tanh %129 : vector<8x32xf32>
    %131 = arith.mulf %126, %130 : vector<8x32xf32>
    %c4_i32 = arith.constant 4 : i32
    %132 = arith.index_cast %c4_i32 : i32 to index
    %c0_37 = arith.constant 0 : index
    %c0_38 = arith.constant 0 : index
    %133 = vector.load %arg6[%132, %c0_37, %c0_38] : memref<8x8x128xf32, #tpu.memory_space<vmem>>, vector<1x8x128xf32>
    %134 = vector.shape_cast %133 : vector<1x8x128xf32> to vector<8x128xf32>
    %cst_39 = arith.constant dense<0.000000e+00> : vector<8x128xf32>
    %135 = tpu.matmul %131, %9, %cst_39 {dimension_numbers = #tpu.dot_dimension_numbers<[1], [0], [0], [1], [0, 0, 1, 1], [], []>} : vector<8x32xf32>, vector<32x128xf32>, vector<8x128xf32> -> vector<8x128xf32>
    %136 = arith.addf %134, %135 : vector<8x128xf32>
    %137 = vector.extract_strided_slice %136 {offsets = [0, 0], sizes = [8, 32], strides = [1, 1]} : vector<8x128xf32> to vector<8x32xf32>
    %138 = arith.negf %137 : vector<8x32xf32>
    %139 = math.exp %138 : vector<8x32xf32>
    %cst_40 = arith.constant 1.000000e+00 : f32
    %140 = vector.broadcast %cst_40 : f32 to vector<8x32xf32>
    %141 = arith.addf %140, %139 : vector<8x32xf32>
    %142 = arith.divf %140, %141 : vector<8x32xf32>
    %143 = vector.extract_strided_slice %136 {offsets = [0, 32], sizes = [8, 32], strides = [1, 1]} : vector<8x128xf32> to vector<8x32xf32>
    %144 = arith.negf %143 : vector<8x32xf32>
    %145 = math.exp %144 : vector<8x32xf32>
    %cst_41 = arith.constant 1.000000e+00 : f32
    %146 = vector.broadcast %cst_41 : f32 to vector<8x32xf32>
    %147 = arith.addf %146, %145 : vector<8x32xf32>
    %148 = arith.divf %146, %147 : vector<8x32xf32>
    %149 = vector.extract_strided_slice %136 {offsets = [0, 64], sizes = [8, 32], strides = [1, 1]} : vector<8x128xf32> to vector<8x32xf32>
    %150 = math.tanh %149 : vector<8x32xf32>
    %151 = vector.extract_strided_slice %136 {offsets = [0, 96], sizes = [8, 32], strides = [1, 1]} : vector<8x128xf32> to vector<8x32xf32>
    %152 = arith.negf %151 : vector<8x32xf32>
    %153 = math.exp %152 : vector<8x32xf32>
    %cst_42 = arith.constant 1.000000e+00 : f32
    %154 = vector.broadcast %cst_42 : f32 to vector<8x32xf32>
    %155 = arith.addf %154, %153 : vector<8x32xf32>
    %156 = arith.divf %154, %155 : vector<8x32xf32>
    %157 = arith.mulf %148, %129 : vector<8x32xf32>
    %158 = arith.mulf %142, %150 : vector<8x32xf32>
    %159 = arith.addf %157, %158 : vector<8x32xf32>
    %160 = math.tanh %159 : vector<8x32xf32>
    %161 = arith.mulf %156, %160 : vector<8x32xf32>
    %c5_i32 = arith.constant 5 : i32
    %162 = arith.index_cast %c5_i32 : i32 to index
    %c0_43 = arith.constant 0 : index
    %c0_44 = arith.constant 0 : index
    %163 = vector.load %arg6[%162, %c0_43, %c0_44] : memref<8x8x128xf32, #tpu.memory_space<vmem>>, vector<1x8x128xf32>
    %164 = vector.shape_cast %163 : vector<1x8x128xf32> to vector<8x128xf32>
    %cst_45 = arith.constant dense<0.000000e+00> : vector<8x128xf32>
    %165 = tpu.matmul %161, %9, %cst_45 {dimension_numbers = #tpu.dot_dimension_numbers<[1], [0], [0], [1], [0, 0, 1, 1], [], []>} : vector<8x32xf32>, vector<32x128xf32>, vector<8x128xf32> -> vector<8x128xf32>
    %166 = arith.addf %164, %165 : vector<8x128xf32>
    %167 = vector.extract_strided_slice %166 {offsets = [0, 0], sizes = [8, 32], strides = [1, 1]} : vector<8x128xf32> to vector<8x32xf32>
    %168 = arith.negf %167 : vector<8x32xf32>
    %169 = math.exp %168 : vector<8x32xf32>
    %cst_46 = arith.constant 1.000000e+00 : f32
    %170 = vector.broadcast %cst_46 : f32 to vector<8x32xf32>
    %171 = arith.addf %170, %169 : vector<8x32xf32>
    %172 = arith.divf %170, %171 : vector<8x32xf32>
    %173 = vector.extract_strided_slice %166 {offsets = [0, 32], sizes = [8, 32], strides = [1, 1]} : vector<8x128xf32> to vector<8x32xf32>
    %174 = arith.negf %173 : vector<8x32xf32>
    %175 = math.exp %174 : vector<8x32xf32>
    %cst_47 = arith.constant 1.000000e+00 : f32
    %176 = vector.broadcast %cst_47 : f32 to vector<8x32xf32>
    %177 = arith.addf %176, %175 : vector<8x32xf32>
    %178 = arith.divf %176, %177 : vector<8x32xf32>
    %179 = vector.extract_strided_slice %166 {offsets = [0, 64], sizes = [8, 32], strides = [1, 1]} : vector<8x128xf32> to vector<8x32xf32>
    %180 = math.tanh %179 : vector<8x32xf32>
    %181 = vector.extract_strided_slice %166 {offsets = [0, 96], sizes = [8, 32], strides = [1, 1]} : vector<8x128xf32> to vector<8x32xf32>
    %182 = arith.negf %181 : vector<8x32xf32>
    %183 = math.exp %182 : vector<8x32xf32>
    %cst_48 = arith.constant 1.000000e+00 : f32
    %184 = vector.broadcast %cst_48 : f32 to vector<8x32xf32>
    %185 = arith.addf %184, %183 : vector<8x32xf32>
    %186 = arith.divf %184, %185 : vector<8x32xf32>
    %187 = arith.mulf %178, %159 : vector<8x32xf32>
    %188 = arith.mulf %172, %180 : vector<8x32xf32>
    %189 = arith.addf %187, %188 : vector<8x32xf32>
    %190 = math.tanh %189 : vector<8x32xf32>
    %191 = arith.mulf %186, %190 : vector<8x32xf32>
    %c6_i32 = arith.constant 6 : i32
    %192 = arith.index_cast %c6_i32 : i32 to index
    %c0_49 = arith.constant 0 : index
    %c0_50 = arith.constant 0 : index
    %193 = vector.load %arg6[%192, %c0_49, %c0_50] : memref<8x8x128xf32, #tpu.memory_space<vmem>>, vector<1x8x128xf32>
    %194 = vector.shape_cast %193 : vector<1x8x128xf32> to vector<8x128xf32>
    %cst_51 = arith.constant dense<0.000000e+00> : vector<8x128xf32>
    %195 = tpu.matmul %191, %9, %cst_51 {dimension_numbers = #tpu.dot_dimension_numbers<[1], [0], [0], [1], [0, 0, 1, 1], [], []>} : vector<8x32xf32>, vector<32x128xf32>, vector<8x128xf32> -> vector<8x128xf32>
    %196 = arith.addf %194, %195 : vector<8x128xf32>
    %197 = vector.extract_strided_slice %196 {offsets = [0, 0], sizes = [8, 32], strides = [1, 1]} : vector<8x128xf32> to vector<8x32xf32>
    %198 = arith.negf %197 : vector<8x32xf32>
    %199 = math.exp %198 : vector<8x32xf32>
    %cst_52 = arith.constant 1.000000e+00 : f32
    %200 = vector.broadcast %cst_52 : f32 to vector<8x32xf32>
    %201 = arith.addf %200, %199 : vector<8x32xf32>
    %202 = arith.divf %200, %201 : vector<8x32xf32>
    %203 = vector.extract_strided_slice %196 {offsets = [0, 32], sizes = [8, 32], strides = [1, 1]} : vector<8x128xf32> to vector<8x32xf32>
    %204 = arith.negf %203 : vector<8x32xf32>
    %205 = math.exp %204 : vector<8x32xf32>
    %cst_53 = arith.constant 1.000000e+00 : f32
    %206 = vector.broadcast %cst_53 : f32 to vector<8x32xf32>
    %207 = arith.addf %206, %205 : vector<8x32xf32>
    %208 = arith.divf %206, %207 : vector<8x32xf32>
    %209 = vector.extract_strided_slice %196 {offsets = [0, 64], sizes = [8, 32], strides = [1, 1]} : vector<8x128xf32> to vector<8x32xf32>
    %210 = math.tanh %209 : vector<8x32xf32>
    %211 = vector.extract_strided_slice %196 {offsets = [0, 96], sizes = [8, 32], strides = [1, 1]} : vector<8x128xf32> to vector<8x32xf32>
    %212 = arith.negf %211 : vector<8x32xf32>
    %213 = math.exp %212 : vector<8x32xf32>
    %cst_54 = arith.constant 1.000000e+00 : f32
    %214 = vector.broadcast %cst_54 : f32 to vector<8x32xf32>
    %215 = arith.addf %214, %213 : vector<8x32xf32>
    %216 = arith.divf %214, %215 : vector<8x32xf32>
    %217 = arith.mulf %208, %189 : vector<8x32xf32>
    %218 = arith.mulf %202, %210 : vector<8x32xf32>
    %219 = arith.addf %217, %218 : vector<8x32xf32>
    %220 = math.tanh %219 : vector<8x32xf32>
    %221 = arith.mulf %216, %220 : vector<8x32xf32>
    %c7_i32 = arith.constant 7 : i32
    %222 = arith.index_cast %c7_i32 : i32 to index
    %c0_55 = arith.constant 0 : index
    %c0_56 = arith.constant 0 : index
    %223 = vector.load %arg6[%222, %c0_55, %c0_56] : memref<8x8x128xf32, #tpu.memory_space<vmem>>, vector<1x8x128xf32>
    %224 = vector.shape_cast %223 : vector<1x8x128xf32> to vector<8x128xf32>
    %cst_57 = arith.constant dense<0.000000e+00> : vector<8x128xf32>
    %225 = tpu.matmul %221, %9, %cst_57 {dimension_numbers = #tpu.dot_dimension_numbers<[1], [0], [0], [1], [0, 0, 1, 1], [], []>} : vector<8x32xf32>, vector<32x128xf32>, vector<8x128xf32> -> vector<8x128xf32>
    %226 = arith.addf %224, %225 : vector<8x128xf32>
    %227 = vector.extract_strided_slice %226 {offsets = [0, 0], sizes = [8, 32], strides = [1, 1]} : vector<8x128xf32> to vector<8x32xf32>
    %228 = arith.negf %227 : vector<8x32xf32>
    %229 = math.exp %228 : vector<8x32xf32>
    %cst_58 = arith.constant 1.000000e+00 : f32
    %230 = vector.broadcast %cst_58 : f32 to vector<8x32xf32>
    %231 = arith.addf %230, %229 : vector<8x32xf32>
    %232 = arith.divf %230, %231 : vector<8x32xf32>
    %233 = vector.extract_strided_slice %226 {offsets = [0, 32], sizes = [8, 32], strides = [1, 1]} : vector<8x128xf32> to vector<8x32xf32>
    %234 = arith.negf %233 : vector<8x32xf32>
    %235 = math.exp %234 : vector<8x32xf32>
    %cst_59 = arith.constant 1.000000e+00 : f32
    %236 = vector.broadcast %cst_59 : f32 to vector<8x32xf32>
    %237 = arith.addf %236, %235 : vector<8x32xf32>
    %238 = arith.divf %236, %237 : vector<8x32xf32>
    %239 = vector.extract_strided_slice %226 {offsets = [0, 64], sizes = [8, 32], strides = [1, 1]} : vector<8x128xf32> to vector<8x32xf32>
    %240 = math.tanh %239 : vector<8x32xf32>
    %241 = vector.extract_strided_slice %226 {offsets = [0, 96], sizes = [8, 32], strides = [1, 1]} : vector<8x128xf32> to vector<8x32xf32>
    %242 = arith.negf %241 : vector<8x32xf32>
    %243 = math.exp %242 : vector<8x32xf32>
    %cst_60 = arith.constant 1.000000e+00 : f32
    %244 = vector.broadcast %cst_60 : f32 to vector<8x32xf32>
    %245 = arith.addf %244, %243 : vector<8x32xf32>
    %246 = arith.divf %244, %245 : vector<8x32xf32>
    %247 = arith.mulf %238, %219 : vector<8x32xf32>
    %248 = arith.mulf %232, %240 : vector<8x32xf32>
    %249 = arith.addf %247, %248 : vector<8x32xf32>
    %250 = math.tanh %249 : vector<8x32xf32>
    %251 = arith.mulf %246, %250 : vector<8x32xf32>
    %c8_i32 = arith.constant 8 : i32
    %c0_61 = arith.constant 0 : index
    %c0_62 = arith.constant 0 : index
    %252 = vector.load %arg4[%c0_61, %c0_62] : memref<8x32xf32, #tpu.memory_space<vmem>>, vector<8x32xf32>
    tpu.vector_store %arg4[%c0_61, %c0_62], %251 {strides = array<i32>} : memref<8x32xf32, #tpu.memory_space<vmem>>, vector<8x32xf32>,
    %c0_63 = arith.constant 0 : index
    %c0_64 = arith.constant 0 : index
    %253 = vector.load %arg5[%c0_63, %c0_64] : memref<8x32xf32, #tpu.memory_space<vmem>>, vector<8x32xf32>
    tpu.vector_store %arg5[%c0_63, %c0_64], %249 {strides = array<i32>} : memref<8x32xf32, #tpu.memory_space<vmem>>, vector<8x32xf32>,
    return
  }
}

</mosaic_0001>

<llo_original>
// kernel: encoder_forward.1
$region0: #{encoder_forward.1}
  #allocation0 [shape = 'u32[]', space=smem, size = 0x4, offset = 0x4, fixed_abs, tag = 'smem constant byte address 0x4 - core index']
  #allocation1 [shape = 'u32[144,128]{1,0:T(1,128)}', space=vmem, size = 0x12000, scoped, tag = 'internal scratch']
  #allocation2 [shape = 'f32[8,8,128]{2,1,0:T(8,128)}', space=vmem, size = 0x8000, scoped, tag = 'scratch operand']
  %s0 = inlined_call_operand.vmem [shape: f32[8,8,32], index: 0, kind: input, shape index: {}]
  %s1 = inlined_call_operand.vmem [shape: f32[32,128], index: 1, kind: input, shape index: {}]
  %s2 = inlined_call_operand.vmem [shape: f32[32,128], index: 2, kind: input, shape index: {}]
  %s3 = inlined_call_operand.vmem [shape: f32[1,128], index: 3, kind: input, shape index: {}]
  %s4 = inlined_call_operand.vmem [shape: f32[8,32], index: 4, kind: output, shape index: {0}]
  %s5 = inlined_call_operand.vmem [shape: f32[8,32], index: 5, kind: output, shape index: {1}]
  %6 = xla_tuple %s4, %s5
  %s7 = sld [smem:[#allocation0]]
  $region34: #{encoder_forward.1} parent=0
    _
  %s9 = ssub.s32 1, %s7
  %s10 = scalar_select 0, %s9, %s7
  // Predicated region
  $region2: #{encoder_forward.1} parent=0 // pred_check
    _
  $region3: #{encoder_forward.1} parent=0 // pred_check_branch
    %12 = sbr.rel (0) target = $region5
  $region4: #{encoder_forward.1} parent=0 // pred_region
    _
  $region5: #{encoder_forward.1} parent=0 // pred_fallthru
    _
  // Predicated region
  $region6: #{encoder_forward.1} parent=0 // pred_check
    _
  $region7: #{encoder_forward.1} parent=0 // pred_check_branch
    %14 = sbr.rel (0) target = $region9
  $region8: #{encoder_forward.1} parent=0 // pred_region
    _
  $region9: #{encoder_forward.1} parent=0 // pred_fallthru
    _
  // Predicated region
  $region10: #{encoder_forward.1} parent=0 // pred_check
    _
  $region11: #{encoder_forward.1} parent=0 // pred_check_branch
    %16 = sbr.rel (0) target = $region13
  $region12: #{encoder_forward.1} parent=0 // pred_region
    _
  $region13: #{encoder_forward.1} parent=0 // pred_fallthru
    _
  // Predicated region
  $region14: #{encoder_forward.1} parent=0 // pred_check
    _
  $region15: #{encoder_forward.1} parent=0 // pred_check_branch
    %18 = sbr.rel (0) target = $region17
  $region16: #{encoder_forward.1} parent=0 // pred_region
    _
  $region17: #{encoder_forward.1} parent=0 // pred_fallthru
    _
  %v19 = vld [vmem:[%s0] sm:$0xff]
  %v20 = vld [vmem:[%s0 + $0x8] sm:$0xff]
  %v21 = vld [vmem:[%s0 + $0x10] sm:$0xff]
  %v22 = vld [vmem:[%s0 + $0x18] sm:$0xff]
  %v23 = vld [vmem:[%s0 + $0x20] sm:$0xff]
  %v24 = vld [vmem:[%s0 + $0x28] sm:$0xff]
  %v25 = vld [vmem:[%s0 + $0x30] sm:$0xff]
  %v26 = vld [vmem:[%s0 + $0x38] sm:$0xff]
  %v27 = vld [vmem:[%s1] sm:$0xff]
  %v28 = vld [vmem:[%s1 + $0x8] sm:$0xff]
  %v29 = vld [vmem:[%s1 + $0x10] sm:$0xff]
  %v30 = vld [vmem:[%s1 + $0x18] sm:$0xff]
  %v31 = vld [vmem:[%s3] sm:$0x1]
  %v33 = vlaneseq
  %v34 = vshrl.u32 %v33, 7
  %v35 = vsub.s32 0, %v34
  %v36 = vrot.slane %v31, %v35
  %vm38 = vcmask 261120
  %v40 = vsel %vm38, %v19, 0
  %v43 = vsel %vm38, %v20, 0
  %v46 = vsel %vm38, %v21, 0
  %v49 = vsel %vm38, %v22, 0
  %v52 = vsel %vm38, %v23, 0
  %v55 = vsel %vm38, %v24, 0
  %v58 = vsel %vm38, %v25, 0
  %v61 = vsel %vm38, %v26, 0
  %63 = vmatprep.subr.mxu0 0.0
  %64 = vmatpush1.msra.mxu0 %v27
  %65 = vmatprep.subr.mxu0 0.0
  %66 = vmatpush1.msra.mxu0 %v28
  %67 = vmatprep.subr.mxu0 0.0
  %68 = vmatpush1.msra.mxu0 %v29
  %69 = vmatprep.subr.mxu0 0.0
  %70 = vmatpush1.msra.mxu0 %v30
  %71 = vmatprep.subr.mxu0 0.0
  %72 = vmatpush1.msra.mxu0 0.0
  %73 = vmatprep.subr.mxu0 0.0
  %74 = vmatpush1.msra.mxu0 0.0
  %75 = vmatprep.subr.mxu0 0.0
  %76 = vmatpush1.msra.mxu0 0.0
  %77 = vmatprep.subr.mxu0 0.0
  %78 = vmatpush1.msra.mxu0 0.0
  %79 = vmatprep.subr.mxu0 0.0
  %80 = vmatpush1.msra.mxu0 0.0
  %81 = vmatprep.subr.mxu0 0.0
  %82 = vmatpush1.msra.mxu0 0.0
  %83 = vmatprep.subr.mxu0 0.0
  %84 = vmatpush1.msra.mxu0 0.0
  %85 = vmatprep.subr.mxu0 0.0
  %86 = vmatpush1.msra.mxu0 0.0
  %87 = vmatprep.subr.mxu0 0.0
  %88 = vmatpush1.msra.mxu0 0.0
  %89 = vmatprep.subr.mxu0 0.0
  %90 = vmatpush1.msra.mxu0 0.0
  %91 = vmatprep.subr.mxu0 0.0
  %92 = vmatpush1.msra.mxu0 0.0
  %93 = vmatprep.subr.mxu0 0.0
  %94 = vmatpush1.msra.mxu0 0.0
  %95 = vmatprep.subr.mxu0 0.0
  %96 = vmatpush1.msra.mxu0 0.0
  %97 = vmatprep.subr.mxu0 0.0
  %98 = vmatpush1.msra.mxu0 0.0
  %99 = vmatprep.subr.mxu0 0.0
  %100 = vmatpush1.msra.mxu0 0.0
  %101 = vmatprep.subr.mxu0 0.0
  %102 = vmatpush1.msra.mxu0 0.0
  %103 = vmatprep.subr.mxu0 0.0
  %104 = vmatpush1.msra.mxu0 0.0
  %105 = vmatprep.subr.mxu0 0.0
  %106 = vmatpush1.msra.mxu0 0.0
  %107 = vmatprep.subr.mxu0 0.0
  %108 = vmatpush1.msra.mxu0 0.0
  %109 = vmatprep.subr.mxu0 0.0
  %110 = vmatpush1.msra.mxu0 0.0
  %111 = vmatprep.subr.mxu0 0.0
  %112 = vmatpush1.msra.mxu0 0.0
  %113 = vmatprep.subr.mxu0 0.0
  %114 = vmatpush1.msra.mxu0 0.0
  %115 = vmatprep.subr.mxu0 0.0
  %116 = vmatpush1.msra.mxu0 0.0
  %117 = vmatprep.subr.mxu0 0.0
  %118 = vmatpush1.msra.mxu0 0.0
  %119 = vmatprep.subr.mxu0 0.0
  %120 = vmatpush1.msra.mxu0 0.0
  %121 = vmatprep.subr.mxu0 0.0
  %122 = vmatpush1.msra.mxu0 0.0
  %123 = vmatprep.subr.mxu0 0.0
  %124 = vmatpush1.msra.mxu0 0.0
  %125 = vmatprep.subr.mxu0 0.0
  %126 = vmatpush1.msra.mxu0 0.0
  %127 = vmatprep.mubr.f32.mxu0 0.0
  %128 = vmatmul.mubr.f32.gmra.mrb[0].mxu0 %v40
  %v129 = vpop.f32.mrb[0].mxu0
  %v130 = vadd.f32 %v36, %v129
  %v131 = vpop.f32.mrb[0].mxu0
  %132 = vmatprep.mubr.f32.mxu0 0.0
  %133 = vmatmul.mubr.f32.gmra.mrb[0].mxu0 %v43
  %v134 = vpop.f32.mrb[0].mxu0
  %v135 = vadd.f32 %v36, %v134
  %v136 = vpop.f32.mrb[0].mxu0
  %137 = vmatprep.mubr.f32.mxu0 0.0
  %138 = vmatmul.mubr.f32.gmra.mrb[0].mxu0 %v46
  %v139 = vpop.f32.mrb[0].mxu0
  %v140 = vadd.f32 %v36, %v139
  %v141 = vpop.f32.mrb[0].mxu0
  %142 = vmatprep.mubr.f32.mxu0 0.0
  %143 = vmatmul.mubr.f32.gmra.mrb[0].mxu0 %v49
  %v144 = vpop.f32.mrb[0].mxu0
  %v145 = vadd.f32 %v36, %v144
  %v146 = vpop.f32.mrb[0].mxu0
  %147 = vmatprep.mubr.f32.mxu0 0.0
  %148 = vmatmul.mubr.f32.gmra.mrb[0].mxu0 %v52
  %v149 = vpop.f32.mrb[0].mxu0
  %v150 = vadd.f32 %v36, %v149
  %v151 = vpop.f32.mrb[0].mxu0
  %152 = vmatprep.mubr.f32.mxu0 0.0
  %153 = vmatmul.mubr.f32.gmra.mrb[0].mxu0 %v55
  %v154 = vpop.f32.mrb[0].mxu0
  %v155 = vadd.f32 %v36, %v154
  %v156 = vpop.f32.mrb[0].mxu0
  %157 = vmatprep.mubr.f32.mxu0 0.0
  %158 = vmatmul.mubr.f32.gmra.mrb[0].mxu0 %v58
  %v159 = vpop.f32.mrb[0].mxu0
  %v160 = vadd.f32 %v36, %v159
  %v161 = vpop.f32.mrb[0].mxu0
  %162 = vmatprep.mubr.f32.mxu0 0.0
  %163 = vmatmul.mubr.f32.gmra.mrb[0].mxu0 %v61
  %v164 = vpop.f32.mrb[0].mxu0
  %v165 = vadd.f32 %v36, %v164
  %v166 = vpop.f32.mrb[0].mxu0
  %167 = vdwg.mxu0
  %168 = vst [vmem:[#allocation2] sm:$0xff] %v130
  %169 = vst [vmem:[#allocation2 + $0x8] sm:$0xff] %v135
  %170 = vst [vmem:[#allocation2 + $0x10] sm:$0xff] %v140
  %171 = vst [vmem:[#allocation2 + $0x18] sm:$0xff] %v145
  %172 = vst [vmem:[#allocation2 + $0x20] sm:$0xff] %v150
  %173 = vst [vmem:[#allocation2 + $0x28] sm:$0xff] %v155
  %174 = vst [vmem:[#allocation2 + $0x30] sm:$0xff] %v160
  %175 = vst [vmem:[#allocation2 + $0x38] sm:$0xff] %v165
  %v176 = vld [vmem:[%s2] sm:$0xff]
  %v177 = vld [vmem:[%s2 + $0x8] sm:$0xff]
  %v178 = vld [vmem:[%s2 + $0x10] sm:$0xff]
  %v179 = vld [vmem:[%s2 + $0x18] sm:$0xff]
  %v180 = vld [vmem:[#allocation2] sm:$0xff]
  %v182 = vsel %vm38, 0.0, 0
  %184 = vmatprep.subr.mxu0 0.0
  %185 = vmatpush1.msra.mxu0 %v176
  %186 = vmatprep.subr.mxu0 0.0
  %187 = vmatpush1.msra.mxu0 %v177
  %188 = vmatprep.subr.mxu0 0.0
  %189 = vmatpush1.msra.mxu0 %v178
  %190 = vmatprep.subr.mxu0 0.0
  %191 = vmatpush1.msra.mxu0 %v179
  %192 = vmatprep.subr.mxu0 0.0
  %193 = vmatpush1.msra.mxu0 0.0
  %194 = vmatprep.subr.mxu0 0.0
  %195 = vmatpush1.msra.mxu0 0.0
  %196 = vmatprep.subr.mxu0 0.0
  %197 = vmatpush1.msra.mxu0 0.0
  %198 = vmatprep.subr.mxu0 0.0
  %199 = vmatpush1.msra.mxu0 0.0
  %200 = vmatprep.subr.mxu0 0.0
  %201 = vmatpush1.msra.mxu0 0.0
  %202 = vmatprep.subr.mxu0 0.0
  %203 = vmatpush1.msra.mxu0 0.0
  %204 = vmatprep.subr.mxu0 0.0
  %205 = vmatpush1.msra.mxu0 0.0
  %206 = vmatprep.subr.mxu0 0.0
  %207 = vmatpush1.msra.mxu0 0.0
  %208 = vmatprep.subr.mxu0 0.0
  %209 = vmatpush1.msra.mxu0 0.0
  %210 = vmatprep.subr.mxu0 0.0
  %211 = vmatpush1.msra.mxu0 0.0
  %212 = vmatprep.subr.mxu0 0.0
  %213 = vmatpush1.msra.mxu0 0.0
  %214 = vmatprep.subr.mxu0 0.0
  %215 = vmatpush1.msra.mxu0 0.0
  %216 = vmatprep.subr.mxu0 0.0
  %217 = vmatpush1.msra.mxu0 0.0
  %218 = vmatprep.subr.mxu0 0.0
  %219 = vmatpush1.msra.mxu0 0.0
  %220 = vmatprep.subr.mxu0 0.0
  %221 = vmatpush1.msra.mxu0 0.0
  %222 = vmatprep.subr.mxu0 0.0
  %223 = vmatpush1.msra.mxu0 0.0
  %224 = vmatprep.subr.mxu0 0.0
  %225 = vmatpush1.msra.mxu0 0.0
  %226 = vmatprep.subr.mxu0 0.0
  %227 = vmatpush1.msra.mxu0 0.0
  %228 = vmatprep.subr.mxu0 0.0
  %229 = vmatpush1.msra.mxu0 0.0
  %230 = vmatprep.subr.mxu0 0.0
  %231 = vmatpush1.msra.mxu0 0.0
  %232 = vmatprep.subr.mxu0 0.0
  %233 = vmatpush1.msra.mxu0 0.0
  %234 = vmatprep.subr.mxu0 0.0
  %235 = vmatpush1.msra.mxu0 0.0
  %236 = vmatprep.subr.mxu0 0.0
  %237 = vmatpush1.msra.mxu0 0.0
  %238 = vmatprep.subr.mxu0 0.0
  %239 = vmatpush1.msra.mxu0 0.0
  %240 = vmatprep.subr.mxu0 0.0
  %241 = vmatpush1.msra.mxu0 0.0
  %242 = vmatprep.subr.mxu0 0.0
  %243 = vmatpush1.msra.mxu0 0.0
  %244 = vmatprep.subr.mxu0 0.0
  %245 = vmatpush1.msra.mxu0 0.0
  %246 = vmatprep.subr.mxu0 0.0
  %247 = vmatpush1.msra.mxu0 0.0
  %248 = vmatprep.mubr.f32.mxu0 0.0
  %249 = vmatmul.mubr.f32.gmra.mrb[0].mxu0 %v182
  %v250 = vpop.f32.mrb[0].mxu0
  %v251 = vadd.f32 0.0, %v250
  %v252 = vpop.f32.mrb[0].mxu0
  %253 = vdwg.mxu0
  %v254 = vadd.f32 %v180, %v251
  %v255 = vxor.u32 %v254, 2147483648
  %v256 = vmul.f32 %v255, 1.442695
  %v257 = vpow.pop %v256
  %v258 = vadd.f32 %v257, 1.0
  %v259 = vrcp.pop %v258
  %v260 = vmul.f32 1.0, %v259
  %v261 = vtanh.pop %v254
  %v262 = vmul.f32 %v260, 0.0
  %264 = vrot.lane.b32.xlu0 %v261, 64
  %v265 = vpop.permute.xlu0 %264
  %v267 = vmul.f32 %v260, %v265
  %269 = vrot.lane.b32.xlu0 %v267, 32
  %v270 = vpop.permute.xlu0 %269
  %v272 = vadd.f32 %v262, %v270
  %v273 = vtanh.pop %v272
  %275 = vrot.lane.b32.xlu0 %v273, 64
  %v276 = vpop.permute.xlu0 %275
  %v278 = vmul.f32 %v260, %v276
  %s279 = scalar_lea.vmem [#allocation2], 8
  %v280 = vld [vmem:[%s279] sm:$0xff]
  %282 = vrot.lane.b32.xlu0 %v278, 32
  %v283 = vpop.permute.xlu0 %282
  %v284 = vsel %vm38, %v283, 0
  %286 = vmatprep.subr.mxu0 0.0
  %287 = vmatpush1.msra.mxu0 %v176
  %288 = vmatprep.subr.mxu0 0.0
  %289 = vmatpush1.msra.mxu0 %v177
  %290 = vmatprep.subr.mxu0 0.0
  %291 = vmatpush1.msra.mxu0 %v178
  %292 = vmatprep.subr.mxu0 0.0
  %293 = vmatpush1.msra.mxu0 %v179
  %294 = vmatprep.subr.mxu0 0.0
  %295 = vmatpush1.msra.mxu0 0.0
  %296 = vmatprep.subr.mxu0 0.0
  %297 = vmatpush1.msra.mxu0 0.0
  %298 = vmatprep.subr.mxu0 0.0
  %299 = vmatpush1.msra.mxu0 0.0
  %300 = vmatprep.subr.mxu0 0.0
  %301 = vmatpush1.msra.mxu0 0.0
  %302 = vmatprep.subr.mxu0 0.0
  %303 = vmatpush1.msra.mxu0 0.0
  %304 = vmatprep.subr.mxu0 0.0
  %305 = vmatpush1.msra.mxu0 0.0
  %306 = vmatprep.subr.mxu0 0.0
  %307 = vmatpush1.msra.mxu0 0.0
  %308 = vmatprep.subr.mxu0 0.0
  %309 = vmatpush1.msra.mxu0 0.0
  %310 = vmatprep.subr.mxu0 0.0
  %311 = vmatpush1.msra.mxu0 0.0
  %312 = vmatprep.subr.mxu0 0.0
  %313 = vmatpush1.msra.mxu0 0.0
  %314 = vmatprep.subr.mxu0 0.0
  %315 = vmatpush1.msra.mxu0 0.0
  %316 = vmatprep.subr.mxu0 0.0
  %317 = vmatpush1.msra.mxu0 0.0
  %318 = vmatprep.subr.mxu0 0.0
  %319 = vmatpush1.msra.mxu0 0.0
  %320 = vmatprep.subr.mxu0 0.0
  %321 = vmatpush1.msra.mxu0 0.0
  %322 = vmatprep.subr.mxu0 0.0
  %323 = vmatpush1.msra.mxu0 0.0
  %324 = vmatprep.subr.mxu0 0.0
  %325 = vmatpush1.msra.mxu0 0.0
  %326 = vmatprep.subr.mxu0 0.0
  %327 = vmatpush1.msra.mxu0 0.0
  %328 = vmatprep.subr.mxu0 0.0
  %329 = vmatpush1.msra.mxu0 0.0
  %330 = vmatprep.subr.mxu0 0.0
  %331 = vmatpush1.msra.mxu0 0.0
  %332 = vmatprep.subr.mxu0 0.0
  %333 = vmatpush1.msra.mxu0 0.0
  %334 = vmatprep.subr.mxu0 0.0
  %335 = vmatpush1.msra.mxu0 0.0
  %336 = vmatprep.subr.mxu0 0.0
  %337 = vmatpush1.msra.mxu0 0.0
  %338 = vmatprep.subr.mxu0 0.0
  %339 = vmatpush1.msra.mxu0 0.0
  %340 = vmatprep.subr.mxu0 0.0
  %341 = vmatpush1.msra.mxu0 0.0
  %342 = vmatprep.subr.mxu0 0.0
  %343 = vmatpush1.msra.mxu0 0.0
  %344 = vmatprep.subr.mxu0 0.0
  %345 = vmatpush1.msra.mxu0 0.0
  %346 = vmatprep.subr.mxu0 0.0
  %347 = vmatpush1.msra.mxu0 0.0
  %348 = vmatprep.subr.mxu0 0.0
  %349 = vmatpush1.msra.mxu0 0.0
  %350 = vmatprep.mubr.f32.mxu0 0.0
  %351 = vmatmul.mubr.f32.gmra.mrb[0].mxu0 %v284
  %v352 = vpop.f32.mrb[0].mxu0
  %v353 = vadd.f32 0.0, %v352
  %v354 = vpop.f32.mrb[0].mxu0
  %355 = vdwg.mxu0
  %v356 = vadd.f32 %v280, %v353
  %v357 = vxor.u32 %v356, 2147483648
  %v358 = vmul.f32 %v357, 1.442695
  %v359 = vpow.pop %v358
  %v360 = vadd.f32 %v359, 1.0
  %v361 = vrcp.pop %v360
  %v362 = vmul.f32 1.0, %v361
  %v363 = vtanh.pop %v356
  %v364 = vmul.f32 %v362, %v272
  %366 = vrot.lane.b32.xlu0 %v363, 64
  %v367 = vpop.permute.xlu0 %366
  %v369 = vmul.f32 %v362, %v367
  %371 = vrot.lane.b32.xlu0 %v369, 32
  %v372 = vpop.permute.xlu0 %371
  %v374 = vadd.f32 %v364, %v372
  %v375 = vtanh.pop %v374
  %377 = vrot.lane.b32.xlu0 %v375, 64
  %v378 = vpop.permute.xlu0 %377
  %v380 = vmul.f32 %v362, %v378
  %s381 = scalar_lea.vmem [#allocation2], 16
  %v382 = vld [vmem:[%s381] sm:$0xff]
  %384 = vrot.lane.b32.xlu0 %v380, 32
  %v385 = vpop.permute.xlu0 %384
  %v386 = vsel %vm38, %v385, 0
  %388 = vmatprep.subr.mxu0 0.0
  %389 = vmatpush1.msra.mxu0 %v176
  %390 = vmatprep.subr.mxu0 0.0
  %391 = vmatpush1.msra.mxu0 %v177
  %392 = vmatprep.subr.mxu0 0.0
  %393 = vmatpush1.msra.mxu0 %v178
  %394 = vmatprep.subr.mxu0 0.0
  %395 = vmatpush1.msra.mxu0 %v179
  %396 = vmatprep.subr.mxu0 0.0
  %397 = vmatpush1.msra.mxu0 0.0
  %398 = vmatprep.subr.mxu0 0.0
  %399 = vmatpush1.msra.mxu0 0.0
  %400 = vmatprep.subr.mxu0 0.0
  %401 = vmatpush1.msra.mxu0 0.0
  %402 = vmatprep.subr.mxu0 0.0
  %403 = vmatpush1.msra.mxu0 0.0
  %404 = vmatprep.subr.mxu0 0.0
  %405 = vmatpush1.msra.mxu0 0.0
  %406 = vmatprep.subr.mxu0 0.0
  %407 = vmatpush1.msra.mxu0 0.0
  %408 = vmatprep.subr.mxu0 0.0
  %409 = vmatpush1.msra.mxu0 0.0
  %410 = vmatprep.subr.mxu0 0.0
  %411 = vmatpush1.msra.mxu0 0.0
  %412 = vmatprep.subr.mxu0 0.0
  %413 = vmatpush1.msra.mxu0 0.0
  %414 = vmatprep.subr.mxu0 0.0
  %415 = vmatpush1.msra.mxu0 0.0
  %416 = vmatprep.subr.mxu0 0.0
  %417 = vmatpush1.msra.mxu0 0.0
  %418 = vmatprep.subr.mxu0 0.0
  %419 = vmatpush1.msra.mxu0 0.0
  %420 = vmatprep.subr.mxu0 0.0
  %421 = vmatpush1.msra.mxu0 0.0
  %422 = vmatprep.subr.mxu0 0.0
  %423 = vmatpush1.msra.mxu0 0.0
  %424 = vmatprep.subr.mxu0 0.0
  %425 = vmatpush1.msra.mxu0 0.0
  %426 = vmatprep.subr.mxu0 0.0
  %427 = vmatpush1.msra.mxu0 0.0
  %428 = vmatprep.subr.mxu0 0.0
  %429 = vmatpush1.msra.mxu0 0.0
  %430 = vmatprep.subr.mxu0 0.0
  %431 = vmatpush1.msra.mxu0 0.0
  %432 = vmatprep.subr.mxu0 0.0
  %433 = vmatpush1.msra.mxu0 0.0
  %434 = vmatprep.subr.mxu0 0.0
  %435 = vmatpush1.msra.mxu0 0.0
  %436 = vmatprep.subr.mxu0 0.0
  %437 = vmatpush1.msra.mxu0 0.0
  %438 = vmatprep.subr.mxu0 0.0
  %439 = vmatpush1.msra.mxu0 0.0
  %440 = vmatprep.subr.mxu0 0.0
  %441 = vmatpush1.msra.mxu0 0.0
  %442 = vmatprep.subr.mxu0 0.0
  %443 = vmatpush1.msra.mxu0 0.0
  %444 = vmatprep.subr.mxu0 0.0
  %445 = vmatpush1.msra.mxu0 0.0
  %446 = vmatprep.subr.mxu0 0.0
  %447 = vmatpush1.msra.mxu0 0.0
  %448 = vmatprep.subr.mxu0 0.0
  %449 = vmatpush1.msra.mxu0 0.0
  %450 = vmatprep.subr.mxu0 0.0
  %451 = vmatpush1.msra.mxu0 0.0
  %452 = vmatprep.mubr.f32.mxu0 0.0
  %453 = vmatmul.mubr.f32.gmra.mrb[0].mxu0 %v386
  %v454 = vpop.f32.mrb[0].mxu0
  %v455 = vadd.f32 0.0, %v454
  %v456 = vpop.f32.mrb[0].mxu0
  %457 = vdwg.mxu0
  %v458 = vadd.f32 %v382, %v455
  %v459 = vxor.u32 %v458, 2147483648
  %v460 = vmul.f32 %v459, 1.442695
  %v461 = vpow.pop %v460
  %v462 = vadd.f32 %v461, 1.0
  %v463 = vrcp.pop %v462
  %v464 = vmul.f32 1.0, %v463
  %v465 = vtanh.pop %v458
  %v466 = vmul.f32 %v464, %v374
  %468 = vrot.lane.b32.xlu0 %v465, 64
  %v469 = vpop.permute.xlu0 %468
  %v471 = vmul.f32 %v464, %v469
  %473 = vrot.lane.b32.xlu0 %v471, 32
  %v474 = vpop.permute.xlu0 %473
  %v476 = vadd.f32 %v466, %v474
  %v477 = vtanh.pop %v476
  %479 = vrot.lane.b32.xlu0 %v477, 64
  %v480 = vpop.permute.xlu0 %479
  %v482 = vmul.f32 %v464, %v480
  %s483 = scalar_lea.vmem [#allocation2], 24
  %v484 = vld [vmem:[%s483] sm:$0xff]
  %486 = vrot.lane.b32.xlu0 %v482, 32
  %v487 = vpop.permute.xlu0 %486
  %v488 = vsel %vm38, %v487, 0
  %490 = vmatprep.subr.mxu0 0.0
  %491 = vmatpush1.msra.mxu0 %v176
  %492 = vmatprep.subr.mxu0 0.0
  %493 = vmatpush1.msra.mxu0 %v177
  %494 = vmatprep.subr.mxu0 0.0
  %495 = vmatpush1.msra.mxu0 %v178
  %496 = vmatprep.subr.mxu0 0.0
  %497 = vmatpush1.msra.mxu0 %v179
  %498 = vmatprep.subr.mxu0 0.0
  %499 = vmatpush1.msra.mxu0 0.0
  %500 = vmatprep.subr.mxu0 0.0
  %501 = vmatpush1.msra.mxu0 0.0
  %502 = vmatprep.subr.mxu0 0.0
  %503 = vmatpush1.msra.mxu0 0.0
  %504 = vmatprep.subr.mxu0 0.0
  %505 = vmatpush1.msra.mxu0 0.0
  %506 = vmatprep.subr.mxu0 0.0
  %507 = vmatpush1.msra.mxu0 0.0
  %508 = vmatprep.subr.mxu0 0.0
  %509 = vmatpush1.msra.mxu0 0.0
  %510 = vmatprep.subr.mxu0 0.0
  %511 = vmatpush1.msra.mxu0 0.0
  %512 = vmatprep.subr.mxu0 0.0
  %513 = vmatpush1.msra.mxu0 0.0
  %514 = vmatprep.subr.mxu0 0.0
  %515 = vmatpush1.msra.mxu0 0.0
  %516 = vmatprep.subr.mxu0 0.0
  %517 = vmatpush1.msra.mxu0 0.0
  %518 = vmatprep.subr.mxu0 0.0
  %519 = vmatpush1.msra.mxu0 0.0
  %520 = vmatprep.subr.mxu0 0.0
  %521 = vmatpush1.msra.mxu0 0.0
  %522 = vmatprep.subr.mxu0 0.0
  %523 = vmatpush1.msra.mxu0 0.0
  %524 = vmatprep.subr.mxu0 0.0
  %525 = vmatpush1.msra.mxu0 0.0
  %526 = vmatprep.subr.mxu0 0.0
  %527 = vmatpush1.msra.mxu0 0.0
  %528 = vmatprep.subr.mxu0 0.0
  %529 = vmatpush1.msra.mxu0 0.0
  %530 = vmatprep.subr.mxu0 0.0
  %531 = vmatpush1.msra.mxu0 0.0
  %532 = vmatprep.subr.mxu0 0.0
  %533 = vmatpush1.msra.mxu0 0.0
  %534 = vmatprep.subr.mxu0 0.0
  %535 = vmatpush1.msra.mxu0 0.0
  %536 = vmatprep.subr.mxu0 0.0
  %537 = vmatpush1.msra.mxu0 0.0
  %538 = vmatprep.subr.mxu0 0.0
  %539 = vmatpush1.msra.mxu0 0.0
  %540 = vmatprep.subr.mxu0 0.0
  %541 = vmatpush1.msra.mxu0 0.0
  %542 = vmatprep.subr.mxu0 0.0
  %543 = vmatpush1.msra.mxu0 0.0
  %544 = vmatprep.subr.mxu0 0.0
  %545 = vmatpush1.msra.mxu0 0.0
  %546 = vmatprep.subr.mxu0 0.0
  %547 = vmatpush1.msra.mxu0 0.0
  %548 = vmatprep.subr.mxu0 0.0
  %549 = vmatpush1.msra.mxu0 0.0
  %550 = vmatprep.subr.mxu0 0.0
  %551 = vmatpush1.msra.mxu0 0.0
  %552 = vmatprep.subr.mxu0 0.0
  %553 = vmatpush1.msra.mxu0 0.0
  %554 = vmatprep.mubr.f32.mxu0 0.0
  %555 = vmatmul.mubr.f32.gmra.mrb[0].mxu0 %v488
  %v556 = vpop.f32.mrb[0].mxu0
  %v557 = vadd.f32 0.0, %v556
  %v558 = vpop.f32.mrb[0].mxu0
  %559 = vdwg.mxu0
  %v560 = vadd.f32 %v484, %v557
  %v561 = vxor.u32 %v560, 2147483648
  %v562 = vmul.f32 %v561, 1.442695
  %v563 = vpow.pop %v562
  %v564 = vadd.f32 %v563, 1.0
  %v565 = vrcp.pop %v564
  %v566 = vmul.f32 1.0, %v565
  %v567 = vtanh.pop %v560
  %v568 = vmul.f32 %v566, %v476
  %570 = vrot.lane.b32.xlu0 %v567, 64
  %v571 = vpop.permute.xlu0 %570
  %v573 = vmul.f32 %v566, %v571
  %575 = vrot.lane.b32.xlu0 %v573, 32
  %v576 = vpop.permute.xlu0 %575
  %v578 = vadd.f32 %v568, %v576
  %v579 = vtanh.pop %v578
  %581 = vrot.lane.b32.xlu0 %v579, 64
  %v582 = vpop.permute.xlu0 %581
  %v584 = vmul.f32 %v566, %v582
  %s585 = scalar_lea.vmem [#allocation2], 32
  %v586 = vld [vmem:[%s585] sm:$0xff]
  %588 = vrot.lane.b32.xlu0 %v584, 32
  %v589 = vpop.permute.xlu0 %588
  %v590 = vsel %vm38, %v589, 0
  %592 = vmatprep.subr.mxu0 0.0
  %593 = vmatpush1.msra.mxu0 %v176
  %594 = vmatprep.subr.mxu0 0.0
  %595 = vmatpush1.msra.mxu0 %v177
  %596 = vmatprep.subr.mxu0 0.0
  %597 = vmatpush1.msra.mxu0 %v178
  %598 = vmatprep.subr.mxu0 0.0
  %599 = vmatpush1.msra.mxu0 %v179
  %600 = vmatprep.subr.mxu0 0.0
  %601 = vmatpush1.msra.mxu0 0.0
  %602 = vmatprep.subr.mxu0 0.0
  %603 = vmatpush1.msra.mxu0 0.0
  %604 = vmatprep.subr.mxu0 0.0
  %605 = vmatpush1.msra.mxu0 0.0
  %606 = vmatprep.subr.mxu0 0.0
  %607 = vmatpush1.msra.mxu0 0.0
  %608 = vmatprep.subr.mxu0 0.0
  %609 = vmatpush1.msra.mxu0 0.0
  %610 = vmatprep.subr.mxu0 0.0
  %611 = vmatpush1.msra.mxu0 0.0
  %612 = vmatprep.subr.mxu0 0.0
  %613 = vmatpush1.msra.mxu0 0.0
  %614 = vmatprep.subr.mxu0 0.0
  %615 = vmatpush1.msra.mxu0 0.0
  %616 = vmatprep.subr.mxu0 0.0
  %617 = vmatpush1.msra.mxu0 0.0
  %618 = vmatprep.subr.mxu0 0.0
  %619 = vmatpush1.msra.mxu0 0.0
  %620 = vmatprep.subr.mxu0 0.0
  %621 = vmatpush1.msra.mxu0 0.0
  %622 = vmatprep.subr.mxu0 0.0
  %623 = vmatpush1.msra.mxu0 0.0
  %624 = vmatprep.subr.mxu0 0.0
  %625 = vmatpush1.msra.mxu0 0.0
  %626 = vmatprep.subr.mxu0 0.0
  %627 = vmatpush1.msra.mxu0 0.0
  %628 = vmatprep.subr.mxu0 0.0
  %629 = vmatpush1.msra.mxu0 0.0
  %630 = vmatprep.subr.mxu0 0.0
  %631 = vmatpush1.msra.mxu0 0.0
  %632 = vmatprep.subr.mxu0 0.0
  %633 = vmatpush1.msra.mxu0 0.0
  %634 = vmatprep.subr.mxu0 0.0
  %635 = vmatpush1.msra.mxu0 0.0
  %636 = vmatprep.subr.mxu0 0.0
  %637 = vmatpush1.msra.mxu0 0.0
  %638 = vmatprep.subr.mxu0 0.0
  %639 = vmatpush1.msra.mxu0 0.0
  %640 = vmatprep.subr.mxu0 0.0
  %641 = vmatpush1.msra.mxu0 0.0
  %642 = vmatprep.subr.mxu0 0.0
  %643 = vmatpush1.msra.mxu0 0.0
  %644 = vmatprep.subr.mxu0 0.0
  %645 = vmatpush1.msra.mxu0 0.0
  %646 = vmatprep.subr.mxu0 0.0
  %647 = vmatpush1.msra.mxu0 0.0
  %648 = vmatprep.subr.mxu0 0.0
  %649 = vmatpush1.msra.mxu0 0.0
  %650 = vmatprep.subr.mxu0 0.0
  %651 = vmatpush1.msra.mxu0 0.0
  %652 = vmatprep.subr.mxu0 0.0
  %653 = vmatpush1.msra.mxu0 0.0
  %654 = vmatprep.subr.mxu0 0.0
  %655 = vmatpush1.msra.mxu0 0.0
  %656 = vmatprep.mubr.f32.mxu0 0.0
  %657 = vmatmul.mubr.f32.gmra.mrb[0].mxu0 %v590
  %v658 = vpop.f32.mrb[0].mxu0
  %v659 = vadd.f32 0.0, %v658
  %v660 = vpop.f32.mrb[0].mxu0
  %661 = vdwg.mxu0
  %v662 = vadd.f32 %v586, %v659
  %v663 = vxor.u32 %v662, 2147483648
  %v664 = vmul.f32 %v663, 1.442695
  %v665 = vpow.pop %v664
  %v666 = vadd.f32 %v665, 1.0
  %v667 = vrcp.pop %v666
  %v668 = vmul.f32 1.0, %v667
  %v669 = vtanh.pop %v662
  %v670 = vmul.f32 %v668, %v578
  %672 = vrot.lane.b32.xlu0 %v669, 64
  %v673 = vpop.permute.xlu0 %672
  %v675 = vmul.f32 %v668, %v673
  %677 = vrot.lane.b32.xlu0 %v675, 32
  %v678 = vpop.permute.xlu0 %677
  %v680 = vadd.f32 %v670, %v678
  %v681 = vtanh.pop %v680
  %683 = vrot.lane.b32.xlu0 %v681, 64
  %v684 = vpop.permute.xlu0 %683
  %v686 = vmul.f32 %v668, %v684
  %s687 = scalar_lea.vmem [#allocation2], 40
  %v688 = vld [vmem:[%s687] sm:$0xff]
  %690 = vrot.lane.b32.xlu0 %v686, 32
  %v691 = vpop.permute.xlu0 %690
  %v692 = vsel %vm38, %v691, 0
  %694 = vmatprep.subr.mxu0 0.0
  %695 = vmatpush1.msra.mxu0 %v176
  %696 = vmatprep.subr.mxu0 0.0
  %697 = vmatpush1.msra.mxu0 %v177
  %698 = vmatprep.subr.mxu0 0.0
  %699 = vmatpush1.msra.mxu0 %v178
  %700 = vmatprep.subr.mxu0 0.0
  %701 = vmatpush1.msra.mxu0 %v179
  %702 = vmatprep.subr.mxu0 0.0
  %703 = vmatpush1.msra.mxu0 0.0
  %704 = vmatprep.subr.mxu0 0.0
  %705 = vmatpush1.msra.mxu0 0.0
  %706 = vmatprep.subr.mxu0 0.0
  %707 = vmatpush1.msra.mxu0 0.0
  %708 = vmatprep.subr.mxu0 0.0
  %709 = vmatpush1.msra.mxu0 0.0
  %710 = vmatprep.subr.mxu0 0.0
  %711 = vmatpush1.msra.mxu0 0.0
  %712 = vmatprep.subr.mxu0 0.0
  %713 = vmatpush1.msra.mxu0 0.0
  %714 = vmatprep.subr.mxu0 0.0
  %715 = vmatpush1.msra.mxu0 0.0
  %716 = vmatprep.subr.mxu0 0.0
  %717 = vmatpush1.msra.mxu0 0.0
  %718 = vmatprep.subr.mxu0 0.0
  %719 = vmatpush1.msra.mxu0 0.0
  %720 = vmatprep.subr.mxu0 0.0
  %721 = vmatpush1.msra.mxu0 0.0
  %722 = vmatprep.subr.mxu0 0.0
  %723 = vmatpush1.msra.mxu0 0.0
  %724 = vmatprep.subr.mxu0 0.0
  %725 = vmatpush1.msra.mxu0 0.0
  %726 = vmatprep.subr.mxu0 0.0
  %727 = vmatpush1.msra.mxu0 0.0
  %728 = vmatprep.subr.mxu0 0.0
  %729 = vmatpush1.msra.mxu0 0.0
  %730 = vmatprep.subr.mxu0 0.0
  %731 = vmatpush1.msra.mxu0 0.0
  %732 = vmatprep.subr.mxu0 0.0
  %733 = vmatpush1.msra.mxu0 0.0
  %734 = vmatprep.subr.mxu0 0.0
  %735 = vmatpush1.msra.mxu0 0.0
  %736 = vmatprep.subr.mxu0 0.0
  %737 = vmatpush1.msra.mxu0 0.0
  %738 = vmatprep.subr.mxu0 0.0
  %739 = vmatpush1.msra.mxu0 0.0
  %740 = vmatprep.subr.mxu0 0.0
  %741 = vmatpush1.msra.mxu0 0.0
  %742 = vmatprep.subr.mxu0 0.0
  %743 = vmatpush1.msra.mxu0 0.0
  %744 = vmatprep.subr.mxu0 0.0
  %745 = vmatpush1.msra.mxu0 0.0
  %746 = vmatprep.subr.mxu0 0.0
  %747 = vmatpush1.msra.mxu0 0.0
  %748 = vmatprep.subr.mxu0 0.0
  %749 = vmatpush1.msra.mxu0 0.0
  %750 = vmatprep.subr.mxu0 0.0
  %751 = vmatpush1.msra.mxu0 0.0
  %752 = vmatprep.subr.mxu0 0.0
  %753 = vmatpush1.msra.mxu0 0.0
  %754 = vmatprep.subr.mxu0 0.0
  %755 = vmatpush1.msra.mxu0 0.0
  %756 = vmatprep.subr.mxu0 0.0
  %757 = vmatpush1.msra.mxu0 0.0
  %758 = vmatprep.mubr.f32.mxu0 0.0
  %759 = vmatmul.mubr.f32.gmra.mrb[0].mxu0 %v692
  %v760 = vpop.f32.mrb[0].mxu0
  %v761 = vadd.f32 0.0, %v760
  %v762 = vpop.f32.mrb[0].mxu0
  %763 = vdwg.mxu0
  %v764 = vadd.f32 %v688, %v761
  %v765 = vxor.u32 %v764, 2147483648
  %v766 = vmul.f32 %v765, 1.442695
  %v767 = vpow.pop %v766
  %v768 = vadd.f32 %v767, 1.0
  %v769 = vrcp.pop %v768
  %v770 = vmul.f32 1.0, %v769
  %v771 = vtanh.pop %v764
  %v772 = vmul.f32 %v770, %v680
  %774 = vrot.lane.b32.xlu0 %v771, 64
  %v775 = vpop.permute.xlu0 %774
  %v777 = vmul.f32 %v770, %v775
  %779 = vrot.lane.b32.xlu0 %v777, 32
  %v780 = vpop.permute.xlu0 %779
  %v782 = vadd.f32 %v772, %v780
  %v783 = vtanh.pop %v782
  %785 = vrot.lane.b32.xlu0 %v783, 64
  %v786 = vpop.permute.xlu0 %785
  %v788 = vmul.f32 %v770, %v786
  %s789 = scalar_lea.vmem [#allocation2], 48
  %v790 = vld [vmem:[%s789] sm:$0xff]
  %792 = vrot.lane.b32.xlu0 %v788, 32
  %v793 = vpop.permute.xlu0 %792
  %v794 = vsel %vm38, %v793, 0
  %796 = vmatprep.subr.mxu0 0.0
  %797 = vmatpush1.msra.mxu0 %v176
  %798 = vmatprep.subr.mxu0 0.0
  %799 = vmatpush1.msra.mxu0 %v177
  %800 = vmatprep.subr.mxu0 0.0
  %801 = vmatpush1.msra.mxu0 %v178
  %802 = vmatprep.subr.mxu0 0.0
  %803 = vmatpush1.msra.mxu0 %v179
  %804 = vmatprep.subr.mxu0 0.0
  %805 = vmatpush1.msra.mxu0 0.0
  %806 = vmatprep.subr.mxu0 0.0
  %807 = vmatpush1.msra.mxu0 0.0
  %808 = vmatprep.subr.mxu0 0.0
  %809 = vmatpush1.msra.mxu0 0.0
  %810 = vmatprep.subr.mxu0 0.0
  %811 = vmatpush1.msra.mxu0 0.0
  %812 = vmatprep.subr.mxu0 0.0
  %813 = vmatpush1.msra.mxu0 0.0
  %814 = vmatprep.subr.mxu0 0.0
  %815 = vmatpush1.msra.mxu0 0.0
  %816 = vmatprep.subr.mxu0 0.0
  %817 = vmatpush1.msra.mxu0 0.0
  %818 = vmatprep.subr.mxu0 0.0
  %819 = vmatpush1.msra.mxu0 0.0
  %820 = vmatprep.subr.mxu0 0.0
  %821 = vmatpush1.msra.mxu0 0.0
  %822 = vmatprep.subr.mxu0 0.0
  %823 = vmatpush1.msra.mxu0 0.0
  %824 = vmatprep.subr.mxu0 0.0
  %825 = vmatpush1.msra.mxu0 0.0
  %826 = vmatprep.subr.mxu0 0.0
  %827 = vmatpush1.msra.mxu0 0.0
  %828 = vmatprep.subr.mxu0 0.0
  %829 = vmatpush1.msra.mxu0 0.0
  %830 = vmatprep.subr.mxu0 0.0
  %831 = vmatpush1.msra.mxu0 0.0
  %832 = vmatprep.subr.mxu0 0.0
  %833 = vmatpush1.msra.mxu0 0.0
  %834 = vmatprep.subr.mxu0 0.0
  %835 = vmatpush1.msra.mxu0 0.0
  %836 = vmatprep.subr.mxu0 0.0
  %837 = vmatpush1.msra.mxu0 0.0
  %838 = vmatprep.subr.mxu0 0.0
  %839 = vmatpush1.msra.mxu0 0.0
  %840 = vmatprep.subr.mxu0 0.0
  %841 = vmatpush1.msra.mxu0 0.0
  %842 = vmatprep.subr.mxu0 0.0
  %843 = vmatpush1.msra.mxu0 0.0
  %844 = vmatprep.subr.mxu0 0.0
  %845 = vmatpush1.msra.mxu0 0.0
  %846 = vmatprep.subr.mxu0 0.0
  %847 = vmatpush1.msra.mxu0 0.0
  %848 = vmatprep.subr.mxu0 0.0
  %849 = vmatpush1.msra.mxu0 0.0
  %850 = vmatprep.subr.mxu0 0.0
  %851 = vmatpush1.msra.mxu0 0.0
  %852 = vmatprep.subr.mxu0 0.0
  %853 = vmatpush1.msra.mxu0 0.0
  %854 = vmatprep.subr.mxu0 0.0
  %855 = vmatpush1.msra.mxu0 0.0
  %856 = vmatprep.subr.mxu0 0.0
  %857 = vmatpush1.msra.mxu0 0.0
  %858 = vmatprep.subr.mxu0 0.0
  %859 = vmatpush1.msra.mxu0 0.0
  %860 = vmatprep.mubr.f32.mxu0 0.0
  %861 = vmatmul.mubr.f32.gmra.mrb[0].mxu0 %v794
  %v862 = vpop.f32.mrb[0].mxu0
  %v863 = vadd.f32 0.0, %v862
  %v864 = vpop.f32.mrb[0].mxu0
  %865 = vdwg.mxu0
  %v866 = vadd.f32 %v790, %v863
  %v867 = vxor.u32 %v866, 2147483648
  %v868 = vmul.f32 %v867, 1.442695
  %v869 = vpow.pop %v868
  %v870 = vadd.f32 %v869, 1.0
  %v871 = vrcp.pop %v870
  %v872 = vmul.f32 1.0, %v871
  %v873 = vtanh.pop %v866
  %v874 = vmul.f32 %v872, %v782
  %876 = vrot.lane.b32.xlu0 %v873, 64
  %v877 = vpop.permute.xlu0 %876
  %v879 = vmul.f32 %v872, %v877
  %881 = vrot.lane.b32.xlu0 %v879, 32
  %v882 = vpop.permute.xlu0 %881
  %v884 = vadd.f32 %v874, %v882
  %v885 = vtanh.pop %v884
  %887 = vrot.lane.b32.xlu0 %v885, 64
  %v888 = vpop.permute.xlu0 %887
  %v890 = vmul.f32 %v872, %v888
  %s891 = scalar_lea.vmem [#allocation2], 56
  %v892 = vld [vmem:[%s891] sm:$0xff]
  %894 = vrot.lane.b32.xlu0 %v890, 32
  %v895 = vpop.permute.xlu0 %894
  %v896 = vsel %vm38, %v895, 0
  %898 = vmatprep.subr.mxu0 0.0
  %899 = vmatpush1.msra.mxu0 %v176
  %900 = vmatprep.subr.mxu0 0.0
  %901 = vmatpush1.msra.mxu0 %v177
  %902 = vmatprep.subr.mxu0 0.0
  %903 = vmatpush1.msra.mxu0 %v178
  %904 = vmatprep.subr.mxu0 0.0
  %905 = vmatpush1.msra.mxu0 %v179
  %906 = vmatprep.subr.mxu0 0.0
  %907 = vmatpush1.msra.mxu0 0.0
  %908 = vmatprep.subr.mxu0 0.0
  %909 = vmatpush1.msra.mxu0 0.0
  %910 = vmatprep.subr.mxu0 0.0
  %911 = vmatpush1.msra.mxu0 0.0
  %912 = vmatprep.subr.mxu0 0.0
  %913 = vmatpush1.msra.mxu0 0.0
  %914 = vmatprep.subr.mxu0 0.0
  %915 = vmatpush1.msra.mxu0 0.0
  %916 = vmatprep.subr.mxu0 0.0
  %917 = vmatpush1.msra.mxu0 0.0
  %918 = vmatprep.subr.mxu0 0.0
  %919 = vmatpush1.msra.mxu0 0.0
  %920 = vmatprep.subr.mxu0 0.0
  %921 = vmatpush1.msra.mxu0 0.0
  %922 = vmatprep.subr.mxu0 0.0
  %923 = vmatpush1.msra.mxu0 0.0
  %924 = vmatprep.subr.mxu0 0.0
  %925 = vmatpush1.msra.mxu0 0.0
  %926 = vmatprep.subr.mxu0 0.0
  %927 = vmatpush1.msra.mxu0 0.0
  %928 = vmatprep.subr.mxu0 0.0
  %929 = vmatpush1.msra.mxu0 0.0
  %930 = vmatprep.subr.mxu0 0.0
  %931 = vmatpush1.msra.mxu0 0.0
  %932 = vmatprep.subr.mxu0 0.0
  %933 = vmatpush1.msra.mxu0 0.0
  %934 = vmatprep.subr.mxu0 0.0
  %935 = vmatpush1.msra.mxu0 0.0
  %936 = vmatprep.subr.mxu0 0.0
  %937 = vmatpush1.msra.mxu0 0.0
  %938 = vmatprep.subr.mxu0 0.0
  %939 = vmatpush1.msra.mxu0 0.0
  %940 = vmatprep.subr.mxu0 0.0
  %941 = vmatpush1.msra.mxu0 0.0
  %942 = vmatprep.subr.mxu0 0.0
  %943 = vmatpush1.msra.mxu0 0.0
  %944 = vmatprep.subr.mxu0 0.0
  %945 = vmatpush1.msra.mxu0 0.0
  %946 = vmatprep.subr.mxu0 0.0
  %947 = vmatpush1.msra.mxu0 0.0
  %948 = vmatprep.subr.mxu0 0.0
  %949 = vmatpush1.msra.mxu0 0.0
  %950 = vmatprep.subr.mxu0 0.0
  %951 = vmatpush1.msra.mxu0 0.0
  %952 = vmatprep.subr.mxu0 0.0
  %953 = vmatpush1.msra.mxu0 0.0
  %954 = vmatprep.subr.mxu0 0.0
  %955 = vmatpush1.msra.mxu0 0.0
  %956 = vmatprep.subr.mxu0 0.0
  %957 = vmatpush1.msra.mxu0 0.0
  %958 = vmatprep.subr.mxu0 0.0
  %959 = vmatpush1.msra.mxu0 0.0
  %960 = vmatprep.subr.mxu0 0.0
  %961 = vmatpush1.msra.mxu0 0.0
  %962 = vmatprep.mubr.f32.mxu0 0.0
  %963 = vmatmul.mubr.f32.gmra.mrb[0].mxu0 %v896
  %v964 = vpop.f32.mrb[0].mxu0
  %v965 = vadd.f32 0.0, %v964
  %v966 = vpop.f32.mrb[0].mxu0
  %967 = vdwg.mxu0
  %v968 = vadd.f32 %v892, %v965
  %v969 = vxor.u32 %v968, 2147483648
  %v970 = vmul.f32 %v969, 1.442695
  %v971 = vpow.pop %v970
  %v972 = vadd.f32 %v971, 1.0
  %v973 = vrcp.pop %v972
  %v974 = vmul.f32 1.0, %v973
  %v975 = vtanh.pop %v968
  %v976 = vmul.f32 %v974, %v884
  %978 = vrot.lane.b32.xlu0 %v975, 64
  %v979 = vpop.permute.xlu0 %978
  %v981 = vmul.f32 %v974, %v979
  %983 = vrot.lane.b32.xlu0 %v981, 32
  %v984 = vpop.permute.xlu0 %983
  %v986 = vadd.f32 %v976, %v984
  %v987 = vtanh.pop %v986
  %989 = vrot.lane.b32.xlu0 %v987, 64
  %v990 = vpop.permute.xlu0 %989
  %v992 = vmul.f32 %v974, %v990
  %994 = vrot.lane.b32.xlu0 %v992, 32
  %v995 = vpop.permute.xlu0 %994
  %997 = vst.msk [vmem:[%s4] sm:$0xff] %vm38, %v995
  %999 = vrot.lane.b32.xlu0 %v986, 96
  %v1000 = vpop.permute.xlu0 %999
  %1002 = vst.msk [vmem:[%s5] sm:$0xff] %vm38, %v1000
  // Predicated region
  $region18: #{encoder_forward.1} parent=0 // pred_check
    _
  $region19: #{encoder_forward.1} parent=0 // pred_check_branch
    %1004 = sbr.rel (0) target = $region21
  $region20: #{encoder_forward.1} parent=0 // pred_region
    _
  $region21: #{encoder_forward.1} parent=0 // pred_fallthru
    _
  // Predicated region
  $region22: #{encoder_forward.1} parent=0 // pred_check
    _
  $region23: #{encoder_forward.1} parent=0 // pred_check_branch
    %1006 = sbr.rel (0) target = $region25
  $region24: #{encoder_forward.1} parent=0 // pred_region
    _
  $region25: #{encoder_forward.1} parent=0 // pred_fallthru
    _
  // Predicated region
  $region26: #{encoder_forward.1} parent=0 // pred_check
    _
  $region27: #{encoder_forward.1} parent=0 // pred_check_branch
    %1008 = sbr.rel (0) target = $region29
  $region28: #{encoder_forward.1} parent=0 // pred_region
    _
  $region29: #{encoder_forward.1} parent=0 // pred_fallthru
    _
  // Predicated region
  $region30: #{encoder_forward.1} parent=0 // pred_check
    _
  $region31: #{encoder_forward.1} parent=0 // pred_check_branch
    %1010 = sbr.rel (0) target = $region33
  $region32: #{encoder_forward.1} parent=0 // pred_region
    _
  $region33: #{encoder_forward.1} parent=0 // pred_fallthru
    _

</llo_original>
